<compile_context>
chip_gen: v5e
topology: v5e:2x2
jax: 0.10.0
libtpu: 0.0.40
codegen_flags: <defaults>
</compile_context>

<pallas_src>
import math

import jax
import jax.numpy as jnp
from jax.experimental import pallas as pl
from jax.experimental.pallas import tpu as pltpu


def _round_up(x, m):
    return ((x + m - 1) // m) * m


def _pick_tile(total, desired, granularity):
    """Largest tile <= desired that divides `total`, preferring multiples of
    `granularity`; falls back to the full dimension."""
    if total <= desired:
        return total
    t = (desired // granularity) * granularity
    while t >= granularity:
        if total % t == 0:
            return t
        t -= granularity
    return total


def _swiglu_mlp_kernel(x_ref, wg_ref, bg_ref, wu_ref, bu_ref, wd_ref, bd_ref,
                       o_ref, acc_ref):
    """grid = (row tiles, I tiles). Axis 1 (I) is a reduction into the f32
    VMEM accumulator; output is written once on the final I step."""
    j = pl.program_id(1)

    @pl.when(j == 0)
    def _init():
        acc_ref[...] = jnp.zeros_like(acc_ref)

    x = x_ref[...]                                                      # (tm, D)
    # gate / up slabs for this I tile, f32 accumulation on the MXU.
    g = jnp.dot(x, wg_ref[...], preferred_element_type=jnp.float32) + bg_ref[...]
    u = jnp.dot(x, wu_ref[...], preferred_element_type=jnp.float32) + bu_ref[...]
    # SiLU(g) * u in f32, then partial down-proj accumulated in f32.
    h = (g * jax.nn.sigmoid(g)) * u                                     # (tm, ti)
    acc_ref[...] += jnp.dot(h.astype(wd_ref.dtype), wd_ref[...],
                            preferred_element_type=jnp.float32)

    @pl.when(j == pl.num_programs(1) - 1)
    def _finalize():
        # down-proj bias added exactly once, after the full I reduction.
        o_ref[...] = (acc_ref[...] + bd_ref[...]).astype(o_ref.dtype)


def llama_mlp_pallas(x, wg, bg, wu, bu, wd, bd, *, tm=256, ti=512):
    """y = silu(x@wg+bg) * (x@wu+bu) @ wd + bd   (dropout = identity, eval).

    x: (M, D); wg/wu: (D, I); bg/bu: (1, I); wd: (I, D); bd: (1, D).
    Row count M is padded to a multiple of the row tile inside the wrapper.
    """
    M, D = x.shape
    I = wg.shape[1]

    # Row tile: multiple of 8 (sublane granularity), never larger than needed.
    tm = max(8, min(_round_up(tm, 8), _round_up(M, 8)))
    M_pad = _round_up(M, tm)
    # Intermediate tile: divides I, multiple of 128 (MXU/lane granularity)
    # where possible.
    ti = _pick_tile(I, ti, 128)

    x_p = x
    if M_pad != M:
        x_p = jnp.zeros((M_pad, D), x.dtype).at[:M, :].set(x)

    grid = (M_pad // tm, I // ti)

    # Rough VMEM budget (double-buffered tiles + f32 accumulator + slabs),
    # clamped to stay within every generation's physical VMEM.
    wbytes = jnp.dtype(wg.dtype).itemsize
    xbytes = jnp.dtype(x.dtype).itemsize
    tile_bytes = (2 * tm * D * xbytes                    # x tiles
                  + 2 * (2 * D * ti + ti * D) * wbytes   # wg, wu, wd tiles
                  + 2 * (2 * ti + D) * wbytes            # bias tiles
                  + 2 * tm * D * xbytes                  # output tiles
                  + tm * D * 4                           # f32 accumulator
                  + 4 * tm * ti * 4)                     # g/u/h intermediates
    vmem_limit = int(min(max(2 * tile_bytes, 8 * 1024 * 1024),
                         64 * 1024 * 1024))

    cost = pl.CostEstimate(
        flops=6 * M * D * I,
        transcendentals=M * I,
        bytes_accessed=int(
            sum(int(a.size) * jnp.dtype(a.dtype).itemsize
                for a in (x, wg, bg, wu, bu, wd, bd)) + M * D * xbytes))

    out = pl.pallas_call(
        _swiglu_mlp_kernel,
        out_shape=jax.ShapeDtypeStruct((M_pad, D), x.dtype),
        grid_spec=pltpu.PrefetchScalarGridSpec(
            num_scalar_prefetch=0,
            grid=grid,
            in_specs=[
                pl.BlockSpec((tm, D), lambda i, j: (i, 0)),   # x row tile
                pl.BlockSpec((D, ti), lambda i, j: (0, j)),   # gate weight tile
                pl.BlockSpec((1, ti), lambda i, j: (0, j)),   # gate bias tile
                pl.BlockSpec((D, ti), lambda i, j: (0, j)),   # up weight tile
                pl.BlockSpec((1, ti), lambda i, j: (0, j)),   # up bias tile
                pl.BlockSpec((ti, D), lambda i, j: (j, 0)),   # down weight tile
                pl.BlockSpec((1, D), lambda i, j: (0, 0)),    # down bias
            ],
            out_specs=pl.BlockSpec((tm, D), lambda i, j: (i, 0)),
            scratch_shapes=[pltpu.VMEM((tm, D), jnp.float32)],
        ),
        compiler_params=pltpu.CompilerParams(
            dimension_semantics=("parallel", "arbitrary"),
            vmem_limit_bytes=vmem_limit),
        cost_estimate=cost,
    )(x_p, wg, bg, wu, bu, wd, bd)

    return out[:M] if M_pad != M else out


def _init_linear(key, fan_in, fan_out, dtype=jnp.float32):
    """nn.Linear-style init: U(-1/sqrt(fan_in), 1/sqrt(fan_in)).
    Weight in (in, out) layout plus bias (1, out)."""
    kw, kb = jax.random.split(key)
    bound = 1.0 / math.sqrt(fan_in)
    w = jax.random.uniform(kw, (fan_in, fan_out), dtype, -bound, bound)
    b = jax.random.uniform(kb, (1, fan_out), dtype, -bound, bound)
    return w, b


def reference_mlp(x, wg, bg, wu, bu, wd, bd):
    g = x @ wg + bg
    u = x @ wu + bu
    h = jax.nn.silu(g) * u
    return h @ wd + bd


if __name__ == "__main__":
    # Small but lane-dense config (avoids masked-store paths that a D=32/I=64
    # toy config would exercise): batch=2, seq=8, n_embd=128,
    # intermediate_size=256, bias=True, dropout=0.0 (eval).
    batch, seq, n_embd, inter = 2, 8, 128, 256

    key = jax.random.PRNGKey(0)
    kx, kg, ku, kd = jax.random.split(key, 4)

    x3d = jax.random.normal(kx, (batch, seq, n_embd), jnp.float32)
    x = x3d.reshape(batch * seq, n_embd)            # (M, D) token-major

    wg, bg = _init_linear(kg, n_embd, inter)        # gate_proj
    wu, bu = _init_linear(ku, n_embd, inter)        # up_proj
    wd, bd = _init_linear(kd, inter, n_embd)        # down_proj

    out = llama_mlp_pallas(x, wg, bg, wu, bu, wd, bd)
    out = jax.block_until_ready(out)

    ref = reference_mlp(x, wg, bg, wu, bu, wd, bd)
    assert out.shape == (batch * seq, n_embd)
    assert jnp.allclose(out, ref, atol=1e-3, rtol=1e-3), "mismatch vs reference"

    # reshape back to (batch, seq, n_embd) as the module would return
    _ = out.reshape(batch, seq, n_embd)

    print("KERNEL_OK")
</pallas_src>

<mosaic_0001>
module attributes {stable_mosaic.version = 11 : i64} {
  func.func @_swiglu_mlp_kernel(%arg0: i32, %arg1: i32, %arg2: memref<16x128xf32, #tpu.memory_space<vmem>>, %arg3: memref<128x256xf32, #tpu.memory_space<vmem>>, %arg4: memref<1x256xf32, #tpu.memory_space<vmem>>, %arg5: memref<128x256xf32, #tpu.memory_space<vmem>>, %arg6: memref<1x256xf32, #tpu.memory_space<vmem>>, %arg7: memref<256x128xf32, #tpu.memory_space<vmem>>, %arg8: memref<1x128xf32, #tpu.memory_space<vmem>>, %arg9: memref<16x128xf32, #tpu.memory_space<vmem>>, %arg10: memref<16x128xf32, #tpu.memory_space<vmem>>) attributes {dimension_semantics = [#tpu.dimension_semantics<parallel>, #tpu.dimension_semantics<arbitrary>], iteration_bounds = array<i64: 1, 1>, scalar_prefetch = 0 : i64, scratch_operands = 1 : i64, tpu.core_type = #tpu.core_type<tc>, window_params = [{transform_indices = @transform_0, window_bounds = array<i64: 16, 128>}, {transform_indices = @transform_1, window_bounds = array<i64: 128, 256>}, {transform_indices = @transform_2, window_bounds = array<i64: 1, 256>}, {transform_indices = @transform_3, window_bounds = array<i64: 128, 256>}, {transform_indices = @transform_4, window_bounds = array<i64: 1, 256>}, {transform_indices = @transform_5, window_bounds = array<i64: 256, 128>}, {pipeline_mode = #tpu.pipeline_mode<synchronous>, transform_indices = @transform_6, window_bounds = array<i64: 1, 128>}, {transform_indices = @transform_7, window_bounds = array<i64: 16, 128>}]} {
    %c0_i32 = arith.constant 0 : i32
    %0 = arith.cmpi eq, %arg1, %c0_i32 : i32
    %1 = arith.extui %0 : i1 to i32
    %c0_i32_0 = arith.constant 0 : i32
    %2 = arith.cmpi ne, %1, %c0_i32_0 : i32
    scf.if %2 {
      %cst_21 = arith.constant 0.000000e+00 : f32
      %29 = vector.broadcast %cst_21 : f32 to vector<16x128xf32>
      %c0_22 = arith.constant 0 : index
      %c0_23 = arith.constant 0 : index
      %30 = vector.load %arg10[%c0_22, %c0_23] : memref<16x128xf32, #tpu.memory_space<vmem>>, vector<16x128xf32>
      tpu.vector_store %arg10[%c0_22, %c0_23], %29 {strides = array<i32>} : memref<16x128xf32, #tpu.memory_space<vmem>>, vector<16x128xf32>,
    } else {
    }
    %c0 = arith.constant 0 : index
    %c0_1 = arith.constant 0 : index
    %3 = vector.load %arg2[%c0, %c0_1] : memref<16x128xf32, #tpu.memory_space<vmem>>, vector<16x128xf32>
    %c0_2 = arith.constant 0 : index
    %c0_3 = arith.constant 0 : index
    %4 = vector.load %arg3[%c0_2, %c0_3] : memref<128x256xf32, #tpu.memory_space<vmem>>, vector<128x256xf32>
    %cst = arith.constant dense<0.000000e+00> : vector<16x256xf32>
    %5 = tpu.matmul %3, %4, %cst {dimension_numbers = #tpu.dot_dimension_numbers<[1], [0], [0], [1], [0, 0, 1, 1], [], []>} : vector<16x128xf32>, vector<128x256xf32>, vector<16x256xf32> -> vector<16x256xf32>
    %c0_4 = arith.constant 0 : index
    %c0_5 = arith.constant 0 : index
    %6 = vector.load %arg4[%c0_4, %c0_5] : memref<1x256xf32, #tpu.memory_space<vmem>>, vector<1x256xf32>
    %7 = vector.broadcast %6 : vector<1x256xf32> to vector<16x256xf32>
    %8 = arith.addf %5, %7 : vector<16x256xf32>
    %c0_6 = arith.constant 0 : index
    %c0_7 = arith.constant 0 : index
    %9 = vector.load %arg5[%c0_6, %c0_7] : memref<128x256xf32, #tpu.memory_space<vmem>>, vector<128x256xf32>
    %cst_8 = arith.constant dense<0.000000e+00> : vector<16x256xf32>
    %10 = tpu.matmul %3, %9, %cst_8 {dimension_numbers = #tpu.dot_dimension_numbers<[1], [0], [0], [1], [0, 0, 1, 1], [], []>} : vector<16x128xf32>, vector<128x256xf32>, vector<16x256xf32> -> vector<16x256xf32>
    %c0_9 = arith.constant 0 : index
    %c0_10 = arith.constant 0 : index
    %11 = vector.load %arg6[%c0_9, %c0_10] : memref<1x256xf32, #tpu.memory_space<vmem>>, vector<1x256xf32>
    %12 = vector.broadcast %11 : vector<1x256xf32> to vector<16x256xf32>
    %13 = arith.addf %10, %12 : vector<16x256xf32>
    %14 = arith.negf %8 : vector<16x256xf32>
    %15 = math.exp %14 : vector<16x256xf32>
    %cst_11 = arith.constant 1.000000e+00 : f32
    %16 = vector.broadcast %cst_11 : f32 to vector<16x256xf32>
    %17 = arith.addf %16, %15 : vector<16x256xf32>
    %18 = arith.divf %16, %17 : vector<16x256xf32>
    %19 = arith.mulf %8, %18 : vector<16x256xf32>
    %20 = arith.mulf %19, %13 : vector<16x256xf32>
    %c0_12 = arith.constant 0 : index
    %c0_13 = arith.constant 0 : index
    %21 = vector.load %arg10[%c0_12, %c0_13] : memref<16x128xf32, #tpu.memory_space<vmem>>, vector<16x128xf32>
    %c0_14 = arith.constant 0 : index
    %c0_15 = arith.constant 0 : index
    %22 = vector.load %arg7[%c0_14, %c0_15] : memref<256x128xf32, #tpu.memory_space<vmem>>, vector<256x128xf32>
    %cst_16 = arith.constant dense<0.000000e+00> : vector<16x128xf32>
    %23 = tpu.matmul %20, %22, %cst_16 {dimension_numbers = #tpu.dot_dimension_numbers<[1], [0], [0], [1], [0, 0, 1, 1], [], []>} : vector<16x256xf32>, vector<256x128xf32>, vector<16x128xf32> -> vector<16x128xf32>
    %24 = arith.addf %21, %23 : vector<16x128xf32>
    %c0_17 = arith.constant 0 : index
    %c0_18 = arith.constant 0 : index
    %25 = vector.load %arg10[%c0_17, %c0_18] : memref<16x128xf32, #tpu.memory_space<vmem>>, vector<16x128xf32>
    tpu.vector_store %arg10[%c0_17, %c0_18], %24 {strides = array<i32>} : memref<16x128xf32, #tpu.memory_space<vmem>>, vector<16x128xf32>,
    %c0_i32_19 = arith.constant 0 : i32
    %26 = arith.cmpi eq, %arg1, %c0_i32_19 : i32
    %27 = arith.extui %26 : i1 to i32
    %c0_i32_20 = arith.constant 0 : i32
    %28 = arith.cmpi ne, %27, %c0_i32_20 : i32
    scf.if %28 {
      %c0_21 = arith.constant 0 : index
      %c0_22 = arith.constant 0 : index
      %29 = vector.load %arg10[%c0_21, %c0_22] : memref<16x128xf32, #tpu.memory_space<vmem>>, vector<16x128xf32>
      %c0_23 = arith.constant 0 : index
      %c0_24 = arith.constant 0 : index
      %30 = vector.load %arg8[%c0_23, %c0_24] : memref<1x128xf32, #tpu.memory_space<vmem>>, vector<1x128xf32>
      %31 = vector.broadcast %30 : vector<1x128xf32> to vector<16x128xf32>
      %32 = arith.addf %29, %31 : vector<16x128xf32>
      %c0_25 = arith.constant 0 : index
      %c0_26 = arith.constant 0 : index
      %33 = vector.load %arg9[%c0_25, %c0_26] : memref<16x128xf32, #tpu.memory_space<vmem>>, vector<16x128xf32>
      tpu.vector_store %arg9[%c0_25, %c0_26], %32 {strides = array<i32>} : memref<16x128xf32, #tpu.memory_space<vmem>>, vector<16x128xf32>,
    } else {
    }
    return
  }
  func.func @transform_0(%arg0: i32, %arg1: i32) -> (i32, i32) {
    %c0_i32 = arith.constant 0 : i32
    %c0_i32_0 = arith.constant 0 : i32
    return %arg0, %c0_i32 : i32, i32
  }
  func.func @transform_1(%arg0: i32, %arg1: i32) -> (i32, i32) {
    %c0_i32 = arith.constant 0 : i32
    %c0_i32_0 = arith.constant 0 : i32
    return %c0_i32, %arg1 : i32, i32
  }
  func.func @transform_2(%arg0: i32, %arg1: i32) -> (i32, i32) {
    %c0_i32 = arith.constant 0 : i32
    %c0_i32_0 = arith.constant 0 : i32
    return %c0_i32, %arg1 : i32, i32
  }
  func.func @transform_3(%arg0: i32, %arg1: i32) -> (i32, i32) {
    %c0_i32 = arith.constant 0 : i32
    %c0_i32_0 = arith.constant 0 : i32
    return %c0_i32, %arg1 : i32, i32
  }
  func.func @transform_4(%arg0: i32, %arg1: i32) -> (i32, i32) {
    %c0_i32 = arith.constant 0 : i32
    %c0_i32_0 = arith.constant 0 : i32
    return %c0_i32, %arg1 : i32, i32
  }
  func.func @transform_5(%arg0: i32, %arg1: i32) -> (i32, i32) {
    %c0_i32 = arith.constant 0 : i32
    %c0_i32_0 = arith.constant 0 : i32
    return %arg1, %c0_i32 : i32, i32
  }
  func.func @transform_6(%arg0: i32, %arg1: i32) -> (i32, i32) {
    %c0_i32 = arith.constant 0 : i32
    %c0_i32_0 = arith.constant 0 : i32
    %c0_i32_1 = arith.constant 0 : i32
    return %c0_i32, %c0_i32_0 : i32, i32
  }
  func.func @transform_7(%arg0: i32, %arg1: i32) -> (i32, i32) {
    %c0_i32 = arith.constant 0 : i32
    %c0_i32_0 = arith.constant 0 : i32
    return %arg0, %c0_i32 : i32, i32
  }
}

</mosaic_0001>

<llo_original>
// kernel: tpu_custom_call.1
$region0: #{tpu_custom_call.1}
  #allocation0 [shape = 'u32[]', space=smem, size = 0x4, offset = 0x4, fixed_abs, tag = 'smem constant byte address 0x4 - core index']
  #allocation1 [shape = 'u32[72,128]{1,0:T(1,128)}', space=vmem, size = 0x9000, scoped, tag = 'internal scratch']
  #allocation2 [shape = 'f32[16,128]{1,0:T(8,128)}', space=vmem, size = 0x2000, scoped, tag = 'scratch operand']
  %s0 = inlined_call_operand.hbm [shape: f32[16,128], index: 0, kind: input, shape index: {}]
  %s1 = inlined_call_operand.hbm [shape: f32[128,256], index: 1, kind: input, shape index: {}]
  %s2 = inlined_call_operand.hbm [shape: f32[1,256], index: 2, kind: input, shape index: {}]
  %s3 = inlined_call_operand.hbm [shape: f32[128,256], index: 3, kind: input, shape index: {}]
  %s4 = inlined_call_operand.vmem [shape: f32[1,256], index: 4, kind: input, shape index: {}]
  %s5 = inlined_call_operand.hbm [shape: f32[256,128], index: 5, kind: input, shape index: {}]
  %s6 = inlined_call_operand.vmem [shape: f32[1,128], index: 6, kind: input, shape index: {}]
  %s7 = inlined_call_operand.hbm [shape: f32[16,128], index: 7, kind: output, shape index: {}]
  %s8 = sld [smem:[#allocation0]]
  $region66: #{tpu_custom_call.1} parent=0
    _
  %s10 = ssub.s32 1, %s8
  %s11 = scalar_select 0, %s10, %s8
  $region1: #{tpu_custom_call.1} parent=0
    #allocation3 [shape = 'u8[8192]{0}', space=vmem, size = 0x2000, scoped, tag = 'input window, operand 0, single buffered']
    #allocation4 [shape = 's32[1]{0}', space=sflag, size = 0x4, scoped, tag = 'scoped memory for tpu_custom_call.1']
    #allocation5 [shape = 's32[1]{0}', space=sflag, size = 0x4, scoped, tag = 'scoped memory for tpu_custom_call.1']
    #allocation6 [shape = 'u8[131072]{0}', space=vmem, size = 0x20000, scoped, tag = 'input window, operand 1, single buffered']
    #allocation7 [shape = 's32[1]{0}', space=sflag, size = 0x4, scoped, tag = 'scoped memory for tpu_custom_call.1']
    #allocation8 [shape = 'u8[1024]{0}', space=vmem, size = 0x400, scoped, tag = 'input window, operand 2, single buffered']
    #allocation9 [shape = 'u8[131072]{0}', space=vmem, size = 0x20000, scoped, tag = 'input window, operand 3, single buffered']
    #allocation10 [shape = 's32[1]{0}', space=sflag, size = 0x4, scoped, tag = 'scoped memory for tpu_custom_call.1']
    #allocation11 [shape = 'u8[131072]{0}', space=vmem, size = 0x20000, scoped, tag = 'input window, operand 5, single buffered']
    #allocation12 [shape = 'u8[8192]{0}', space=vmem, size = 0x2000, scoped, tag = 'output window, operand 0, single buffered']
    %12 = vsyncpa [#allocation4], 0
    %13 = vsyncpa [#allocation7], 0
    %14 = vsyncpa [#allocation10], 0
    %15 = vsyncpa [#allocation5], 0
    // Predicated region
    $region2: #{tpu_custom_call.1} parent=1 // pred_check
      _
    $region3: #{tpu_custom_call.1} parent=1 // pred_check_branch
      %17 = sbr.rel (0) target = $region5
    $region4: #{tpu_custom_call.1} parent=1 // pred_region
      %19 = vsyncadd [#allocation4], 0
      %s20 = sshll.u32 %s0, 4
      %s21 = int_to_ptr.hbm [resolvable:$true] %s20
      %s22 = sshll.u32 [#allocation3], 4
      %s23 = int_to_ptr.vmem [resolvable:$true] %s22
      %28 = dma.hbm_to_vmem [thread:$0]  %s21, 256, %s23, [#allocation4], 128, 128, 8
    $region5: #{tpu_custom_call.1} parent=1 // pred_fallthru
      _
    // Predicated region
    $region6: #{tpu_custom_call.1} parent=1 // pred_check
      _
    $region7: #{tpu_custom_call.1} parent=1 // pred_check_branch
      %30 = sbr.rel (0) target = $region9
    $region8: #{tpu_custom_call.1} parent=1 // pred_region
      %32 = vsyncadd [#allocation7], 0
      %s33 = sshll.u32 %s1, 4
      %s34 = int_to_ptr.hbm [resolvable:$true] %s33
      %s35 = sshll.u32 [#allocation6], 4
      %s36 = int_to_ptr.vmem [resolvable:$true] %s35
      %41 = dma.hbm_to_vmem [thread:$0]  %s34, 4096, %s36, [#allocation7], 256, 256, 16
    $region9: #{tpu_custom_call.1} parent=1 // pred_fallthru
      _
    // Predicated region
    $region10: #{tpu_custom_call.1} parent=1 // pred_check
      _
    $region11: #{tpu_custom_call.1} parent=1 // pred_check_branch
      %43 = sbr.rel (0) target = $region13
    $region12: #{tpu_custom_call.1} parent=1 // pred_region
      %45 = vsyncadd [#allocation7], 0
      %s47 = sshll.u32 %s2, 4
      %s48 = int_to_ptr.hbm [resolvable:$true] %s47
      %s49 = sshll.u32 [#allocation8], 4
      %s50 = int_to_ptr.vmem [resolvable:$true] %s49
      %52 = dma.hbm_to_vmem [thread:$0]  %s48, 32, %s50, [#allocation7]
    $region13: #{tpu_custom_call.1} parent=1 // pred_fallthru
      _
    // Predicated region
    $region14: #{tpu_custom_call.1} parent=1 // pred_check
      _
    $region15: #{tpu_custom_call.1} parent=1 // pred_check_branch
      %54 = sbr.rel (0) target = $region17
    $region16: #{tpu_custom_call.1} parent=1 // pred_region
      %56 = vsyncadd [#allocation10], 0
      %s57 = sshll.u32 %s3, 4
      %s58 = int_to_ptr.hbm [resolvable:$true] %s57
      %s59 = sshll.u32 [#allocation9], 4
      %s60 = int_to_ptr.vmem [resolvable:$true] %s59
      %65 = dma.hbm_to_vmem [thread:$0]  %s58, 4096, %s60, [#allocation10], 256, 256, 16
    $region17: #{tpu_custom_call.1} parent=1 // pred_fallthru
      _
    // Predicated region
    $region18: #{tpu_custom_call.1} parent=1 // pred_check
      _
    $region19: #{tpu_custom_call.1} parent=1 // pred_check_branch
      %67 = sbr.rel (0) target = $region21
    $region20: #{tpu_custom_call.1} parent=1 // pred_region
      _
    $region21: #{tpu_custom_call.1} parent=1 // pred_fallthru
      _
    // Predicated region
    $region22: #{tpu_custom_call.1} parent=1 // pred_check
      _
    $region23: #{tpu_custom_call.1} parent=1 // pred_check_branch
      %69 = sbr.rel (0) target = $region25
    $region24: #{tpu_custom_call.1} parent=1 // pred_region
      %71 = vsyncadd [#allocation10], 0
      %s72 = sshll.u32 %s5, 4
      %s73 = int_to_ptr.hbm [resolvable:$true] %s72
      %s74 = sshll.u32 [#allocation11], 4
      %s75 = int_to_ptr.vmem [resolvable:$true] %s74
      %80 = dma.hbm_to_vmem [thread:$0]  %s73, 4096, %s75, [#allocation10], 128, 128, 8
    $region25: #{tpu_custom_call.1} parent=1 // pred_fallthru
      _
    // Predicated region
    $region26: #{tpu_custom_call.1} parent=1 // pred_check
      _
    $region27: #{tpu_custom_call.1} parent=1 // pred_check_branch
      %82 = sbr.rel (0) target = $region29
    $region28: #{tpu_custom_call.1} parent=1 // pred_region
      _
    $region29: #{tpu_custom_call.1} parent=1 // pred_fallthru
      _
    // Predicated region
    $region30: #{tpu_custom_call.1} parent=1 // pred_check
      _
    $region31: #{tpu_custom_call.1} parent=1 // pred_check_branch
      %84 = sbr.rel (0) target = $region33
    $region32: #{tpu_custom_call.1} parent=1 // pred_region
      %86 = dma.done [#allocation4], 256
    $region33: #{tpu_custom_call.1} parent=1 // pred_fallthru
      _
    // Predicated region
    $region34: #{tpu_custom_call.1} parent=1 // pred_check
      _
    $region35: #{tpu_custom_call.1} parent=1 // pred_check_branch
      %88 = sbr.rel (0) target = $region37
    $region36: #{tpu_custom_call.1} parent=1 // pred_region
      %90 = dma.done [#allocation7], 4096
    $region37: #{tpu_custom_call.1} parent=1 // pred_fallthru
      _
    // Predicated region
    $region38: #{tpu_custom_call.1} parent=1 // pred_check
      _
    $region39: #{tpu_custom_call.1} parent=1 // pred_check_branch
      %92 = sbr.rel (0) target = $region41
    $region40: #{tpu_custom_call.1} parent=1 // pred_region
      %94 = dma.done [#allocation7], 32
    $region41: #{tpu_custom_call.1} parent=1 // pred_fallthru
      _
    // Predicated region
    $region42: #{tpu_custom_call.1} parent=1 // pred_check
      _
    $region43: #{tpu_custom_call.1} parent=1 // pred_check_branch
      %96 = sbr.rel (0) target = $region45
    $region44: #{tpu_custom_call.1} parent=1 // pred_region
      %98 = dma.done [#allocation10], 4096
    $region45: #{tpu_custom_call.1} parent=1 // pred_fallthru
      _
    // Predicated region
    $region46: #{tpu_custom_call.1} parent=1 // pred_check
      _
    $region47: #{tpu_custom_call.1} parent=1 // pred_check_branch
      %100 = sbr.rel (0) target = $region49
    $region48: #{tpu_custom_call.1} parent=1 // pred_region
      %102 = dma.done [#allocation10], 4096
    $region49: #{tpu_custom_call.1} parent=1 // pred_fallthru
      _
    %p103 = scmp.eq.s32.totalorder 0, 0
    // Predicated region
    $region50: #{tpu_custom_call.1} parent=1 // pred_check
      %p104 = pneg %p103
    $region51: #{tpu_custom_call.1} parent=1 // pred_check_branch
      %106 = sbr.rel (%p104) target = $region53
    $region52: #{tpu_custom_call.1} parent=1 // pred_region
      %107 = vst [vmem:[#allocation2] sm:$0xff] 0.0
      %108 = vst [vmem:[#allocation2 + $0x8] sm:$0xff] 0.0
    $region53: #{tpu_custom_call.1} parent=1 // pred_fallthru
      _
    %v109 = vld [vmem:[#allocation3] sm:$0xff]
    %v110 = vld [vmem:[#allocation3 + $0x8] sm:$0xff]
    %v111 = vld [vmem:[#allocation6] sm:$0xff]
    %v112 = vld [vmem:[#allocation6 + $0x8] sm:$0xff]
    %v113 = vld [vmem:[#allocation6 + $0x10] sm:$0xff]
    %v114 = vld [vmem:[#allocation6 + $0x18] sm:$0xff]
    %v115 = vld [vmem:[#allocation6 + $0x20] sm:$0xff]
    %v116 = vld [vmem:[#allocation6 + $0x28] sm:$0xff]
    %v117 = vld [vmem:[#allocation6 + $0x30] sm:$0xff]
    %v118 = vld [vmem:[#allocation6 + $0x38] sm:$0xff]
    %v119 = vld [vmem:[#allocation6 + $0x40] sm:$0xff]
    %v120 = vld [vmem:[#allocation6 + $0x48] sm:$0xff]
    %v121 = vld [vmem:[#allocation6 + $0x50] sm:$0xff]
    %v122 = vld [vmem:[#allocation6 + $0x58] sm:$0xff]
    %v123 = vld [vmem:[#allocation6 + $0x60] sm:$0xff]
    %v124 = vld [vmem:[#allocation6 + $0x68] sm:$0xff]
    %v125 = vld [vmem:[#allocation6 + $0x70] sm:$0xff]
    %v126 = vld [vmem:[#allocation6 + $0x78] sm:$0xff]
    %v127 = vld [vmem:[#allocation6 + $0x80] sm:$0xff]
    %v128 = vld [vmem:[#allocation6 + $0x88] sm:$0xff]
    %v129 = vld [vmem:[#allocation6 + $0x90] sm:$0xff]
    %v130 = vld [vmem:[#allocation6 + $0x98] sm:$0xff]
    %v131 = vld [vmem:[#allocation6 + $0xa0] sm:$0xff]
    %v132 = vld [vmem:[#allocation6 + $0xa8] sm:$0xff]
    %v133 = vld [vmem:[#allocation6 + $0xb0] sm:$0xff]
    %v134 = vld [vmem:[#allocation6 + $0xb8] sm:$0xff]
    %v135 = vld [vmem:[#allocation6 + $0xc0] sm:$0xff]
    %v136 = vld [vmem:[#allocation6 + $0xc8] sm:$0xff]
    %v137 = vld [vmem:[#allocation6 + $0xd0] sm:$0xff]
    %v138 = vld [vmem:[#allocation6 + $0xd8] sm:$0xff]
    %v139 = vld [vmem:[#allocation6 + $0xe0] sm:$0xff]
    %v140 = vld [vmem:[#allocation6 + $0xe8] sm:$0xff]
    %v141 = vld [vmem:[#allocation6 + $0xf0] sm:$0xff]
    %v142 = vld [vmem:[#allocation6 + $0xf8] sm:$0xff]
    %v143 = vld [vmem:[#allocation8] sm:$0x3]
    %v145 = vperm.slane %v143, 0
    %v146 = vperm.slane %v143, 1
    %149 = vmatpush.msra.mxu0 %v141
    %150 = vmatpush.msra.mxu0 %v139
    %151 = vmatpush.msra.mxu0 %v137
    %152 = vmatpush.msra.mxu0 %v135
    %153 = vmatpush.msra.mxu0 %v133
    %154 = vmatpush.msra.mxu0 %v131
    %155 = vmatpush.msra.mxu0 %v129
    %156 = vmatpush.msra.mxu0 %v127
    %157 = vmatpush.msra.mxu0 %v125
    %158 = vmatpush.msra.mxu0 %v123
    %159 = vmatpush.msra.mxu0 %v121
    %160 = vmatpush.msra.mxu0 %v119
    %161 = vmatpush.msra.mxu0 %v117
    %162 = vmatpush.msra.mxu0 %v115
    %163 = vmatpush.msra.mxu0 %v113
    %164 = vmatpush.msra.mxu0 %v111
    %165 = vmatmul.f32.gmra.mxu0 %v109
    %v166 = vpop.f32.mrf.mxu0
    %v167 = vadd.f32 %v145, %v166
    %168 = vmatmul.f32.gmra.mxu0 %v110
    %v169 = vpop.f32.mrf.mxu0
    %v170 = vadd.f32 %v145, %v169
    %171 = vdwg.mxu0
    %172 = vmatpush.msra.mxu0 %v142
    %173 = vmatpush.msra.mxu0 %v140
    %174 = vmatpush.msra.mxu0 %v138
    %175 = vmatpush.msra.mxu0 %v136
    %176 = vmatpush.msra.mxu0 %v134
    %177 = vmatpush.msra.mxu0 %v132
    %178 = vmatpush.msra.mxu0 %v130
    %179 = vmatpush.msra.mxu0 %v128
    %180 = vmatpush.msra.mxu0 %v126
    %181 = vmatpush.msra.mxu0 %v124
    %182 = vmatpush.msra.mxu0 %v122
    %183 = vmatpush.msra.mxu0 %v120
    %184 = vmatpush.msra.mxu0 %v118
    %185 = vmatpush.msra.mxu0 %v116
    %186 = vmatpush.msra.mxu0 %v114
    %187 = vmatpush.msra.mxu0 %v112
    %188 = vmatmul.f32.gmra.mxu0 %v109
    %v189 = vpop.f32.mrf.mxu0
    %v190 = vadd.f32 %v146, %v189
    %191 = vmatmul.f32.gmra.mxu0 %v110
    %v192 = vpop.f32.mrf.mxu0
    %v193 = vadd.f32 %v146, %v192
    %194 = vdwg.mxu0
    %v195 = vld [vmem:[#allocation9] sm:$0xff]
    %v196 = vld [vmem:[#allocation9 + $0x8] sm:$0xff]
    %v197 = vld [vmem:[#allocation9 + $0x10] sm:$0xff]
    %v198 = vld [vmem:[#allocation9 + $0x18] sm:$0xff]
    %v199 = vld [vmem:[#allocation9 + $0x20] sm:$0xff]
    %v200 = vld [vmem:[#allocation9 + $0x28] sm:$0xff]
    %v201 = vld [vmem:[#allocation9 + $0x30] sm:$0xff]
    %v202 = vld [vmem:[#allocation9 + $0x38] sm:$0xff]
    %v203 = vld [vmem:[#allocation9 + $0x40] sm:$0xff]
    %v204 = vld [vmem:[#allocation9 + $0x48] sm:$0xff]
    %v205 = vld [vmem:[#allocation9 + $0x50] sm:$0xff]
    %v206 = vld [vmem:[#allocation9 + $0x58] sm:$0xff]
    %v207 = vld [vmem:[#allocation9 + $0x60] sm:$0xff]
    %v208 = vld [vmem:[#allocation9 + $0x68] sm:$0xff]
    %v209 = vld [vmem:[#allocation9 + $0x70] sm:$0xff]
    %v210 = vld [vmem:[#allocation9 + $0x78] sm:$0xff]
    %v211 = vld [vmem:[#allocation9 + $0x80] sm:$0xff]
    %v212 = vld [vmem:[#allocation9 + $0x88] sm:$0xff]
    %v213 = vld [vmem:[#allocation9 + $0x90] sm:$0xff]
    %v214 = vld [vmem:[#allocation9 + $0x98] sm:$0xff]
    %v215 = vld [vmem:[#allocation9 + $0xa0] sm:$0xff]
    %v216 = vld [vmem:[#allocation9 + $0xa8] sm:$0xff]
    %v217 = vld [vmem:[#allocation9 + $0xb0] sm:$0xff]
    %v218 = vld [vmem:[#allocation9 + $0xb8] sm:$0xff]
    %v219 = vld [vmem:[#allocation9 + $0xc0] sm:$0xff]
    %v220 = vld [vmem:[#allocation9 + $0xc8] sm:$0xff]
    %v221 = vld [vmem:[#allocation9 + $0xd0] sm:$0xff]
    %v222 = vld [vmem:[#allocation9 + $0xd8] sm:$0xff]
    %v223 = vld [vmem:[#allocation9 + $0xe0] sm:$0xff]
    %v224 = vld [vmem:[#allocation9 + $0xe8] sm:$0xff]
    %v225 = vld [vmem:[#allocation9 + $0xf0] sm:$0xff]
    %v226 = vld [vmem:[#allocation9 + $0xf8] sm:$0xff]
    %v227 = vld [vmem:[%s4] sm:$0x3]
    %v229 = vperm.slane %v227, 0
    %v230 = vperm.slane %v227, 1
    %233 = vmatpush.msra.mxu0 %v225
    %234 = vmatpush.msra.mxu0 %v223
    %235 = vmatpush.msra.mxu0 %v221
    %236 = vmatpush.msra.mxu0 %v219
    %237 = vmatpush.msra.mxu0 %v217
    %238 = vmatpush.msra.mxu0 %v215
    %239 = vmatpush.msra.mxu0 %v213
    %240 = vmatpush.msra.mxu0 %v211
    %241 = vmatpush.msra.mxu0 %v209
    %242 = vmatpush.msra.mxu0 %v207
    %243 = vmatpush.msra.mxu0 %v205
    %244 = vmatpush.msra.mxu0 %v203
    %245 = vmatpush.msra.mxu0 %v201
    %246 = vmatpush.msra.mxu0 %v199
    %247 = vmatpush.msra.mxu0 %v197
    %248 = vmatpush.msra.mxu0 %v195
    %249 = vmatmul.f32.gmra.mxu0 %v109
    %v250 = vpop.f32.mrf.mxu0
    %v251 = vadd.f32 %v229, %v250
    %252 = vmatmul.f32.gmra.mxu0 %v110
    %v253 = vpop.f32.mrf.mxu0
    %v254 = vadd.f32 %v229, %v253
    %255 = vdwg.mxu0
    %256 = vmatpush.msra.mxu0 %v226
    %257 = vmatpush.msra.mxu0 %v224
    %258 = vmatpush.msra.mxu0 %v222
    %259 = vmatpush.msra.mxu0 %v220
    %260 = vmatpush.msra.mxu0 %v218
    %261 = vmatpush.msra.mxu0 %v216
    %262 = vmatpush.msra.mxu0 %v214
    %263 = vmatpush.msra.mxu0 %v212
    %264 = vmatpush.msra.mxu0 %v210
    %265 = vmatpush.msra.mxu0 %v208
    %266 = vmatpush.msra.mxu0 %v206
    %267 = vmatpush.msra.mxu0 %v204
    %268 = vmatpush.msra.mxu0 %v202
    %269 = vmatpush.msra.mxu0 %v200
    %270 = vmatpush.msra.mxu0 %v198
    %271 = vmatpush.msra.mxu0 %v196
    %272 = vmatmul.f32.gmra.mxu0 %v109
    %v273 = vpop.f32.mrf.mxu0
    %v274 = vadd.f32 %v230, %v273
    %275 = vmatmul.f32.gmra.mxu0 %v110
    %v276 = vpop.f32.mrf.mxu0
    %v277 = vadd.f32 %v230, %v276
    %278 = vdwg.mxu0
    %v279 = vxor.u32 %v167, 2147483648
    %v280 = vxor.u32 %v190, 2147483648
    %v281 = vxor.u32 %v170, 2147483648
    %v282 = vxor.u32 %v193, 2147483648
    %v283 = vmul.f32 %v279, 1.442695
    %v284 = vpow.pop %v283
    %v285 = vmul.f32 %v280, 1.442695
    %v286 = vpow.pop %v285
    %v287 = vmul.f32 %v281, 1.442695
    %v288 = vpow.pop %v287
    %v289 = vmul.f32 %v282, 1.442695
    %v290 = vpow.pop %v289
    %v291 = vadd.f32 %v284, 1.0
    %v292 = vadd.f32 %v286, 1.0
    %v293 = vadd.f32 %v288, 1.0
    %v294 = vadd.f32 %v290, 1.0
    %v295 = vrcp.pop %v291
    %v296 = vmul.f32 %v291, %v295
    %v297 = vsub.f32 1.0, %v296
    %v298 = vmul.f32 %v295, %v297
    %v299 = vadd.f32 %v295, %v298
    %vm300 = vweird.f32 %v291
    %vm301 = vweird.f32 %v295
    %vm302 = vmor %vm300, %vm301
    %v303 = vsel %vm302, %v295, %v299
    %v304 = vand.u32 2147483647, %v291
    %vm305 = vcmp.eq.f32.partialorder %v304, 8.507059e+37
    %v306 = vand.u32 %v291, 2147483648
    %v307 = vor.u32 1.1754944e-38, %v306
    %v308 = vsel %vm305, %v307, %v303
    %v309 = vmul.f32 1.0, %v308
    %v310 = vrcp.pop %v292
    %v311 = vmul.f32 %v292, %v310
    %v312 = vsub.f32 1.0, %v311
    %v313 = vmul.f32 %v310, %v312
    %v314 = vadd.f32 %v310, %v313
    %vm315 = vweird.f32 %v292
    %vm316 = vweird.f32 %v310
    %vm317 = vmor %vm315, %vm316
    %v318 = vsel %vm317, %v310, %v314
    %v319 = vand.u32 2147483647, %v292
    %vm320 = vcmp.eq.f32.partialorder %v319, 8.507059e+37
    %v321 = vand.u32 %v292, 2147483648
    %v322 = vor.u32 1.1754944e-38, %v321
    %v323 = vsel %vm320, %v322, %v318
    %v324 = vmul.f32 1.0, %v323
    %v325 = vrcp.pop %v293
    %v326 = vmul.f32 %v293, %v325
    %v327 = vsub.f32 1.0, %v326
    %v328 = vmul.f32 %v325, %v327
    %v329 = vadd.f32 %v325, %v328
    %vm330 = vweird.f32 %v293
    %vm331 = vweird.f32 %v325
    %vm332 = vmor %vm330, %vm331
    %v333 = vsel %vm332, %v325, %v329
    %v334 = vand.u32 2147483647, %v293
    %vm335 = vcmp.eq.f32.partialorder %v334, 8.507059e+37
    %v336 = vand.u32 %v293, 2147483648
    %v337 = vor.u32 1.1754944e-38, %v336
    %v338 = vsel %vm335, %v337, %v333
    %v339 = vmul.f32 1.0, %v338
    %v340 = vrcp.pop %v294
    %v341 = vmul.f32 %v294, %v340
    %v342 = vsub.f32 1.0, %v341
    %v343 = vmul.f32 %v340, %v342
    %v344 = vadd.f32 %v340, %v343
    %vm345 = vweird.f32 %v294
    %vm346 = vweird.f32 %v340
    %vm347 = vmor %vm345, %vm346
    %v348 = vsel %vm347, %v340, %v344
    %v349 = vand.u32 2147483647, %v294
    %vm350 = vcmp.eq.f32.partialorder %v349, 8.507059e+37
    %v351 = vand.u32 %v294, 2147483648
    %v352 = vor.u32 1.1754944e-38, %v351
    %v353 = vsel %vm350, %v352, %v348
    %v354 = vmul.f32 1.0, %v353
    %v355 = vmul.f32 %v167, %v309
    %v356 = vmul.f32 %v190, %v324
    %v357 = vmul.f32 %v170, %v339
    %v358 = vmul.f32 %v193, %v354
    %v359 = vmul.f32 %v355, %v251
    %v360 = vmul.f32 %v356, %v274
    %v361 = vmul.f32 %v357, %v254
    %v362 = vmul.f32 %v358, %v277
    %v363 = vld [vmem:[#allocation2] sm:$0xff]
    %v364 = vld [vmem:[#allocation2 + $0x8] sm:$0xff]
    %v365 = vld [vmem:[#allocation11] sm:$0xff]
    %v366 = vld [vmem:[#allocation11 + $0x8] sm:$0xff]
    %v367 = vld [vmem:[#allocation11 + $0x10] sm:$0xff]
    %v368 = vld [vmem:[#allocation11 + $0x18] sm:$0xff]
    %v369 = vld [vmem:[#allocation11 + $0x20] sm:$0xff]
    %v370 = vld [vmem:[#allocation11 + $0x28] sm:$0xff]
    %v371 = vld [vmem:[#allocation11 + $0x30] sm:$0xff]
    %v372 = vld [vmem:[#allocation11 + $0x38] sm:$0xff]
    %v373 = vld [vmem:[#allocation11 + $0x40] sm:$0xff]
    %v374 = vld [vmem:[#allocation11 + $0x48] sm:$0xff]
    %v375 = vld [vmem:[#allocation11 + $0x50] sm:$0xff]
    %v376 = vld [vmem:[#allocation11 + $0x58] sm:$0xff]
    %v377 = vld [vmem:[#allocation11 + $0x60] sm:$0xff]
    %v378 = vld [vmem:[#allocation11 + $0x68] sm:$0xff]
    %v379 = vld [vmem:[#allocation11 + $0x70] sm:$0xff]
    %v380 = vld [vmem:[#allocation11 + $0x78] sm:$0xff]
    %v381 = vld [vmem:[#allocation11 + $0x80] sm:$0xff]
    %v382 = vld [vmem:[#allocation11 + $0x88] sm:$0xff]
    %v383 = vld [vmem:[#allocation11 + $0x90] sm:$0xff]
    %v384 = vld [vmem:[#allocation11 + $0x98] sm:$0xff]
    %v385 = vld [vmem:[#allocation11 + $0xa0] sm:$0xff]
    %v386 = vld [vmem:[#allocation11 + $0xa8] sm:$0xff]
    %v387 = vld [vmem:[#allocation11 + $0xb0] sm:$0xff]
    %v388 = vld [vmem:[#allocation11 + $0xb8] sm:$0xff]
    %v389 = vld [vmem:[#allocation11 + $0xc0] sm:$0xff]
    %v390 = vld [vmem:[#allocation11 + $0xc8] sm:$0xff]
    %v391 = vld [vmem:[#allocation11 + $0xd0] sm:$0xff]
    %v392 = vld [vmem:[#allocation11 + $0xd8] sm:$0xff]
    %v393 = vld [vmem:[#allocation11 + $0xe0] sm:$0xff]
    %v394 = vld [vmem:[#allocation11 + $0xe8] sm:$0xff]
    %v395 = vld [vmem:[#allocation11 + $0xf0] sm:$0xff]
    %v396 = vld [vmem:[#allocation11 + $0xf8] sm:$0xff]
    %397 = vmatpush.msra.mxu0 %v380
    %398 = vmatpush.msra.mxu0 %v379
    %399 = vmatpush.msra.mxu0 %v378
    %400 = vmatpush.msra.mxu0 %v377
    %401 = vmatpush.msra.mxu0 %v376
    %402 = vmatpush.msra.mxu0 %v375
    %403 = vmatpush.msra.mxu0 %v374
    %404 = vmatpush.msra.mxu0 %v373
    %405 = vmatpush.msra.mxu0 %v372
    %406 = vmatpush.msra.mxu0 %v371
    %407 = vmatpush.msra.mxu0 %v370
    %408 = vmatpush.msra.mxu0 %v369
    %409 = vmatpush.msra.mxu0 %v368
    %410 = vmatpush.msra.mxu0 %v367
    %411 = vmatpush.msra.mxu0 %v366
    %412 = vmatpush.msra.mxu0 %v365
    %413 = vmatmul.f32.gmra.mxu0 %v359
    %v414 = vpop.f32.mrf.mxu0
    %v415 = vadd.f32 0.0, %v414
    %416 = vmatmul.f32.gmra.mxu0 %v361
    %v417 = vpop.f32.mrf.mxu0
    %v418 = vadd.f32 0.0, %v417
    %419 = vdwg.mxu0
    %420 = vmatpush.msra.mxu0 %v396
    %421 = vmatpush.msra.mxu0 %v395
    %422 = vmatpush.msra.mxu0 %v394
    %423 = vmatpush.msra.mxu0 %v393
    %424 = vmatpush.msra.mxu0 %v392
    %425 = vmatpush.msra.mxu0 %v391
    %426 = vmatpush.msra.mxu0 %v390
    %427 = vmatpush.msra.mxu0 %v389
    %428 = vmatpush.msra.mxu0 %v388
    %429 = vmatpush.msra.mxu0 %v387
    %430 = vmatpush.msra.mxu0 %v386
    %431 = vmatpush.msra.mxu0 %v385
    %432 = vmatpush.msra.mxu0 %v384
    %433 = vmatpush.msra.mxu0 %v383
    %434 = vmatpush.msra.mxu0 %v382
    %435 = vmatpush.msra.mxu0 %v381
    %436 = vmatmul.f32.gmra.mxu0 %v360
    %v437 = vpop.f32.mrf.mxu0
    %v438 = vadd.f32 %v415, %v437
    %439 = vmatmul.f32.gmra.mxu0 %v362
    %v440 = vpop.f32.mrf.mxu0
    %v441 = vadd.f32 %v418, %v440
    %442 = vdwg.mxu0
    %v443 = vadd.f32 %v363, %v438
    %v444 = vadd.f32 %v364, %v441
    %445 = vst [vmem:[#allocation2] sm:$0xff] %v443
    %446 = vst [vmem:[#allocation2 + $0x8] sm:$0xff] %v444
    // Predicated region
    $region54: #{tpu_custom_call.1} parent=1 // pred_check
      %p447 = pneg %p103
    $region55: #{tpu_custom_call.1} parent=1 // pred_check_branch
      %449 = sbr.rel (%p447) target = $region57
    $region56: #{tpu_custom_call.1} parent=1 // pred_region
      %v450 = vld [vmem:[#allocation2] sm:$0xff]
      %v451 = vld [vmem:[#allocation2 + $0x8] sm:$0xff]
      %v452 = vld [vmem:[%s6] sm:$0x1]
      %v454 = vperm.slane %v452, 0
      %v456 = vadd.f32 %v450, %v454
      %v457 = vadd.f32 %v451, %v454
      %458 = vst [vmem:[#allocation12] sm:$0xff] %v456
      %459 = vst [vmem:[#allocation12 + $0x8] sm:$0xff] %v457
    $region57: #{tpu_custom_call.1} parent=1 // pred_fallthru
      _
    // Predicated region
    $region58: #{tpu_custom_call.1} parent=1 // pred_check
      _
    $region59: #{tpu_custom_call.1} parent=1 // pred_check_branch
      %461 = sbr.rel (0) target = $region61
    $region60: #{tpu_custom_call.1} parent=1 // pred_region
      %463 = vsyncadd [#allocation5], 0
      %s464 = sshll.u32 [#allocation12], 4
      %s465 = int_to_ptr.vmem [resolvable:$true] %s464
      %s466 = sshll.u32 %s7, 4
      %s467 = int_to_ptr.hbm [resolvable:$true] %s466
      %472 = dma.vmem_to_hbm [thread:$0]  %s465, 256, %s467, [#allocation5], 128, 128, 8
    $region61: #{tpu_custom_call.1} parent=1 // pred_fallthru
      _
    // Predicated region
    $region62: #{tpu_custom_call.1} parent=1 // pred_check
      _
    $region63: #{tpu_custom_call.1} parent=1 // pred_check_branch
      %474 = sbr.rel (0) target = $region65
    $region64: #{tpu_custom_call.1} parent=1 // pred_region
      %476 = dma.done [#allocation5], 256
    $region65: #{tpu_custom_call.1} parent=1 // pred_fallthru
      _
    %477 = vsyncpa [#allocation4], 1
    %478 = vsyncpa [#allocation7], 1
    %479 = vsyncpa [#allocation10], 1
    %480 = vsyncpa [#allocation5], 1

</llo_original>
